<compile_context>
chip_gen: v7x
topology: tpu7x:2x2x1
jax: 0.10.0
libtpu: 0.0.40
codegen_flags: <defaults>
</compile_context>

<pallas_src>
import math
import functools

import jax
import jax.numpy as jnp
from jax.experimental import pallas as pl
from jax.experimental.pallas import tpu as pltpu


_POS_PER_CHUNK = 16  # P: positions per conv MXU call (P * COUT_PAD == 128 lanes)


def _round_up(x, m):
    return ((x + m - 1) // m) * m


def _cdiv(a, b):
    return -(-a // b)


def fused_policy_kernel(x_ref, wblk_ref, shift_ref, wf_ref, bias_ref, o_ref, h_ref):
    """conv1x1 + BN(eval) + ReLU + all option fc heads for one batch tile.

    x_ref:     (TB, HW_pad*CIN_PAD)      bf16, minor index = p*CIN_PAD + ci
    wblk_ref:  (P*CIN_PAD, P*COUT_PAD)   bf16, block-diagonal BN-folded conv weight
    shift_ref: (1, P*COUT_PAD)           f32,  folded conv-bias / BN shift (tiled over P)
    wf_ref:    (HW_pad*COUT_PAD, N_pad)  bf16, stacked fc weights, row = p*COUT_PAD + co
    bias_ref:  (1, N_pad)                f32,  stacked fc bias (includes +10 / -100 cols)
    o_ref:     (TB, N_pad)               f32,  stacked logits for this batch tile
    h_ref:     (TB, HW_pad*COUT_PAD)     bf16 VMEM scratch (post-ReLU activations)
    """
    k_in = wblk_ref.shape[0]      # P * CIN_PAD
    k_out = wblk_ref.shape[1]     # P * COUT_PAD (== 128)
    n_chunks = h_ref.shape[1] // k_out

    # Conv stage: P positions per MXU call via the block-diagonal weight; every
    # store into the scratch is 128-lane aligned.  n_chunks = HW_pad / P is small
    # (e.g. 23 for a 19x19 board), so a static unroll is fine.
    for c in range(n_chunks):
        xc = x_ref[:, pl.ds(c * k_in, k_in)]
        hc = jnp.dot(xc, wblk_ref[...], preferred_element_type=jnp.float32)
        hc = jnp.maximum(hc + shift_ref[...], 0.0)          # conv1x1 + BN + ReLU
        h_ref[:, pl.ds(c * k_out, k_out)] = hc.astype(h_ref.dtype)

    # Head stage: ONE deep-K matmul over (position, channel) for all heads.
    o_ref[...] = jnp.dot(h_ref[...], wf_ref[...],
                         preferred_element_type=jnp.float32) + bias_ref[...]


@jax.jit
def _policy_forward(x, wblk, shift_blk, wf, bias):
    B, cin, H, W = x.shape
    hw = H * W
    P = _POS_PER_CHUNK
    cin_pad = wblk.shape[0] // P
    cout_pad = wblk.shape[1] // P
    kout = wf.shape[0]
    n_pad = wf.shape[1]
    hw_pad = kout // cout_pad
    kin = hw_pad * cin_pad

    # --- batch tiling: pad only to the 16-row (bf16 sublane) quantum and size the
    #     tile against a conservative VMEM budget (fits v7x's 64 MiB). ---
    weight_bytes = (wblk.size + wf.size) * 2 + (shift_blk.size + bias.size) * 4
    per_row_bytes = 2 * kin * 2 + kout * 2 + 2 * n_pad * 4   # x(dbl,bf16)+scratch+out(dbl,f32)
    budget = 48 * 1024 * 1024
    tile_cap = max(16, min(256, ((budget - weight_bytes) // per_row_bytes) // 16 * 16))
    b16 = _round_up(B, 16)
    n_tiles = _cdiv(b16, tile_cap)
    batch_tile = _round_up(_cdiv(b16, n_tiles), 16)
    b_pad = n_tiles * batch_tile
    # TODO(synk): when n_tiles == 1 the second TensorCore on v7x is idle; a second
    # parallel grid axis over N_pad tiles would split small-batch work across cores.

    # Pack the input: NCHW -> (B_pad, HW_pad*CIN_PAD) bf16 (one layout op).
    xp = jnp.transpose(x.reshape(B, cin, hw), (0, 2, 1))
    xp = jnp.pad(xp, ((0, b_pad - B), (0, hw_pad - hw), (0, cin_pad - cin)))
    xp = xp.reshape(b_pad, kin).astype(jnp.bfloat16)

    vmem_need = (2 * batch_tile * kin * 2 + 2 * batch_tile * n_pad * 4
                 + batch_tile * kout * 2 + weight_bytes + (4 << 20))
    out = pl.pallas_call(
        fused_policy_kernel,
        out_shape=jax.ShapeDtypeStruct((b_pad, n_pad), jnp.float32),
        grid=(n_tiles,),
        in_specs=[
            pl.BlockSpec((batch_tile, kin), lambda i: (i, 0)),     # streamed input
            pl.BlockSpec(memory_space=pltpu.MemorySpace.VMEM),     # wblk  (single copy)
            pl.BlockSpec(memory_space=pltpu.MemorySpace.VMEM),     # shift (single copy)
            pl.BlockSpec(memory_space=pltpu.MemorySpace.VMEM),     # wf    (single copy)
            pl.BlockSpec(memory_space=pltpu.MemorySpace.VMEM),     # bias  (single copy)
        ],
        out_specs=pl.BlockSpec((batch_tile, n_pad), lambda i: (i, 0)),
        scratch_shapes=[pltpu.VMEM((batch_tile, kout), jnp.bfloat16)],
        compiler_params=pltpu.CompilerParams(
            dimension_semantics=("parallel",),
            vmem_limit_bytes=int(min(100 << 20, max(32 << 20, vmem_need)))),
    )(xp, wblk, shift_blk, wf, bias)
    return out[:B]


class PolicyNetworkPallas:
    """Pallas/JAX port of minizero PolicyNetwork (BatchNorm in eval mode)."""

    def __init__(self, num_channels, channel_height, channel_width,
                 action_size, option_seq_length, option_action_size, key):
        self.channel_height = channel_height
        self.channel_width = channel_width
        self.num_output_channels = math.ceil(
            action_size / (channel_height * channel_width))
        self.action_size = action_size
        self.option_seq_length = option_seq_length
        self.option_action_size = option_action_size
        # The original module's option_logit construction only regroups correctly
        # when the padded policy row has exactly option_action_size columns.
        assert option_action_size == action_size + 1, \
            "option_action_size must equal action_size + 1"

        hw = channel_height * channel_width
        cin = num_channels
        noc = self.num_output_channels
        cout = noc * option_seq_length
        keys = jax.random.split(key, 6 + 2 * option_seq_length)

        # ---- PyTorch-layout parameters (also used by the pure-JAX reference) ----
        b1 = 1.0 / math.sqrt(cin)
        self.conv_w_pt = jax.random.uniform(keys[0], (cout, cin), jnp.float32, -b1, b1)
        self.conv_b = jax.random.uniform(keys[1], (cout,), jnp.float32, -b1, b1)

        # BatchNorm2d(cout) params + running stats (randomized so folding is exercised).
        # TODO(synk): train-mode BN (batch stats + running-stat updates) not
        # implemented; eval-mode (running-stats) semantics are used.
        self.bn_gamma = 1.0 + 0.1 * jax.random.normal(keys[2], (cout,), jnp.float32)
        self.bn_beta = 0.1 * jax.random.normal(keys[3], (cout,), jnp.float32)
        self.bn_mean = 0.1 * jax.random.normal(keys[4], (cout,), jnp.float32)
        self.bn_var = jnp.abs(
            1.0 + 0.1 * jax.random.normal(keys[5], (cout,), jnp.float32))
        self.bn_eps = 1e-5

        fin = noc * hw
        b2 = 1.0 / math.sqrt(fin)
        self.fc_w_pt, self.fc_b_pt = [], []
        for i in range(option_seq_length):
            fout = action_size if i == 0 else option_action_size
            w = jax.random.uniform(keys[6 + 2 * i], (fout, fin), jnp.float32, -b2, b2)
            if i == 0:
                b = jax.random.uniform(keys[7 + 2 * i], (fout,), jnp.float32, -b2, b2)
            else:
                # Matches the __init__ hack: bias = 0 except bias[oas - 1] = 10.
                b = jnp.zeros((fout,), jnp.float32).at[option_action_size - 1].set(10.0)
            self.fc_w_pt.append(w)
            self.fc_b_pt.append(b)

        # ---- One-time fold / permute / pad into the fused-kernel operands ----
        P = _POS_PER_CHUNK
        cin_pad = _round_up(cin, 8)
        cout_pad = _round_up(cout, 8)
        hw_pad = _round_up(hw, P)
        n_real = option_seq_length * option_action_size   # [head0 | -100 | head1 | ...]
        n_pad = _round_up(n_real, 128)
        self.n_real = n_real

        scale = self.bn_gamma / jnp.sqrt(self.bn_var + self.bn_eps)          # (cout,)
        shift = (self.conv_b - self.bn_mean) * scale + self.bn_beta          # (cout,)
        wc = jnp.zeros((cin_pad, cout_pad), jnp.float32)
        wc = wc.at[:cin, :cout].set((self.conv_w_pt * scale[:, None]).T)
        # Block-diagonal conv weight: one MXU call per P positions, 128-aligned lanes.
        self.wblk = jnp.kron(jnp.eye(P, dtype=jnp.float32), wc).astype(jnp.bfloat16)
        shift_pad = jnp.zeros((cout_pad,), jnp.float32).at[:cout].set(shift)
        self.shift_blk = jnp.tile(shift_pad, P).reshape(1, P * cout_pad)     # f32

        # Stacked fc weights, rows permuted to the kernel's H layout
        # (row index = position * cout_pad + global output channel).
        wf = jnp.zeros((hw_pad * cout_pad, n_pad), jnp.float32)
        bias = jnp.zeros((n_pad,), jnp.float32)
        col = [0] + [i * option_action_size for i in range(1, option_seq_length)]
        for i in range(option_seq_length):
            fout = action_size if i == 0 else option_action_size
            w_fcp = self.fc_w_pt[i].reshape(fout, noc, hw)                   # [f, c, p]
            blk = jnp.zeros((hw_pad, cout_pad, fout), jnp.float32)
            blk = blk.at[:hw, i * noc:(i + 1) * noc, :].set(
                jnp.transpose(w_fcp, (2, 1, 0)))                             # [p, c, f]
            wf = wf.at[:, col[i]:col[i] + fout].set(
                blk.reshape(hw_pad * cout_pad, fout))
            bias = bias.at[col[i]:col[i] + fout].set(self.fc_b_pt[i])
        bias = bias.at[action_size].set(-100.0)   # padded policy column (zero weights)
        self.wf = wf.astype(jnp.bfloat16)
        self.bias = bias.reshape(1, n_pad)        # f32 (added after the matmul)

    def __call__(self, x):
        # x: (B, Cin, H, W) float32 NCHW — same convention as the PyTorch module.
        B = x.shape[0]
        out = _policy_forward(x, self.wblk, self.shift_blk, self.wf, self.bias)
        policy_logit = out[:, :self.action_size]
        option_logit = out[:, :self.n_real].reshape(
            B, self.option_seq_length, self.option_action_size)
        return policy_logit, option_logit

    def reference_forward(self, x):
        """Pure-JAX mirror of the PyTorch forward (correctness check only)."""
        hp = jax.lax.Precision.HIGHEST
        B = x.shape[0]
        y = jnp.einsum("bchw,oc->bohw", x, self.conv_w_pt, precision=hp)
        y = y + self.conv_b[None, :, None, None]
        scale = self.bn_gamma / jnp.sqrt(self.bn_var + self.bn_eps)
        y = (y - self.bn_mean[None, :, None, None]) * scale[None, :, None, None] \
            + self.bn_beta[None, :, None, None]
        y = jnp.maximum(y, 0.0)
        noc = self.num_output_channels
        outs = []
        for i in range(self.option_seq_length):
            x_i = y[:, i * noc:(i + 1) * noc].reshape(B, -1)
            outs.append(jnp.dot(x_i, self.fc_w_pt[i].T, precision=hp) + self.fc_b_pt[i])
        policy = outs[0]
        tmp = jnp.concatenate(
            [policy, jnp.full((B, 1), -100.0, jnp.float32)], axis=1)
        rows = [tmp[:, None, :]] + [o[:, None, :] for o in outs[1:]]
        option = jnp.concatenate(rows, axis=1)
        return policy, option


if __name__ == "__main__":
    # Small config consistent with the module: B=2, Cin=4, H=W=4, action_size=32
    # -> num_output_channels=2, option_seq_length=3, option_action_size=33.
    B, num_channels, H, W = 2, 4, 4, 4
    action_size = 32
    option_seq_length = 3
    option_action_size = action_size + 1

    key = jax.random.PRNGKey(0)
    k_param, k_x = jax.random.split(key)
    net = PolicyNetworkPallas(num_channels, H, W, action_size,
                              option_seq_length, option_action_size, k_param)
    x = jax.random.normal(k_x, (B, num_channels, H, W), jnp.float32)

    policy_logit, option_logit = net(x)
    jax.block_until_ready((policy_logit, option_logit))

    assert policy_logit.shape == (B, action_size)
    assert option_logit.shape == (B, option_seq_length, option_action_size)
    assert policy_logit.dtype == jnp.float32 and option_logit.dtype == jnp.float32

    # Validate against a pure-JAX mirror of the PyTorch forward.
    ref_policy, ref_option = net.reference_forward(x)
    assert jnp.allclose(policy_logit, ref_policy, rtol=5e-2, atol=5e-2)
    assert jnp.allclose(option_logit, ref_option, rtol=5e-2, atol=5e-2)

    print("KERNEL_OK")
</pallas_src>

<mosaic_0001>
module attributes {stable_mosaic.version = 11 : i64} {
  func.func @fused_policy_kernel(%arg0: i32, %arg1: memref<16x128xbf16, #tpu.memory_space<vmem>>, %arg2: memref<128x128xbf16, #tpu.memory_space<vmem>>, %arg3: memref<1x128xf32, #tpu.memory_space<vmem>>, %arg4: memref<128x128xbf16, #tpu.memory_space<vmem>>, %arg5: memref<1x128xf32, #tpu.memory_space<vmem>>, %arg6: memref<16x128xf32, #tpu.memory_space<vmem>>, %arg7: memref<16x128xbf16, #tpu.memory_space<vmem>>) attributes {dimension_semantics = [#tpu.dimension_semantics<parallel>], iteration_bounds = array<i64: 1>, scalar_prefetch = 0 : i64, scratch_operands = 1 : i64, tpu.core_type = #tpu.core_type<tc>, window_params = [{transform_indices = @transform_0, window_bounds = array<i64: 16, 128>}, {pipeline_mode = #tpu.pipeline_mode<synchronous>, transform_indices = @transform_1, window_bounds = array<i64: 128, 128>}, {pipeline_mode = #tpu.pipeline_mode<synchronous>, transform_indices = @transform_2, window_bounds = array<i64: 1, 128>}, {pipeline_mode = #tpu.pipeline_mode<synchronous>, transform_indices = @transform_3, window_bounds = array<i64: 128, 128>}, {pipeline_mode = #tpu.pipeline_mode<synchronous>, transform_indices = @transform_4, window_bounds = array<i64: 1, 128>}, {transform_indices = @transform_5, window_bounds = array<i64: 16, 128>}]} {
    %c0 = arith.constant 0 : index
    %c0_0 = arith.constant 0 : index
    %0 = vector.load %arg1[%c0, %c0_0] : memref<16x128xbf16, #tpu.memory_space<vmem>>, vector<16x128xbf16>
    %c0_1 = arith.constant 0 : index
    %c0_2 = arith.constant 0 : index
    %1 = vector.load %arg2[%c0_1, %c0_2] : memref<128x128xbf16, #tpu.memory_space<vmem>>, vector<128x128xbf16>
    %cst = arith.constant dense<0.000000e+00> : vector<16x128xf32>
    %2 = tpu.matmul %0, %1, %cst {dimension_numbers = #tpu.dot_dimension_numbers<[1], [0], [0], [1], [0, 0, 1, 1], [], []>} : vector<16x128xbf16>, vector<128x128xbf16>, vector<16x128xf32> -> vector<16x128xf32>
    %c0_3 = arith.constant 0 : index
    %c0_4 = arith.constant 0 : index
    %3 = vector.load %arg3[%c0_3, %c0_4] : memref<1x128xf32, #tpu.memory_space<vmem>>, vector<1x128xf32>
    %4 = vector.broadcast %3 : vector<1x128xf32> to vector<16x128xf32>
    %5 = arith.addf %2, %4 : vector<16x128xf32>
    %cst_5 = arith.constant 0.000000e+00 : f32
    %6 = vector.broadcast %cst_5 : f32 to vector<16x128xf32>
    %7 = arith.maximumf %5, %6 : vector<16x128xf32>
    %8 = arith.truncf %7 : vector<16x128xf32> to vector<16x128xbf16>
    %c0_6 = arith.constant 0 : index
    %c0_7 = arith.constant 0 : index
    %9 = vector.load %arg7[%c0_6, %c0_7] : memref<16x128xbf16, #tpu.memory_space<vmem>>, vector<16x128xbf16>
    tpu.vector_store %arg7[%c0_6, %c0_7], %8 {strides = array<i32>} : memref<16x128xbf16, #tpu.memory_space<vmem>>, vector<16x128xbf16>,
    %c0_8 = arith.constant 0 : index
    %c0_9 = arith.constant 0 : index
    %10 = vector.load %arg7[%c0_8, %c0_9] : memref<16x128xbf16, #tpu.memory_space<vmem>>, vector<16x128xbf16>
    %c0_10 = arith.constant 0 : index
    %c0_11 = arith.constant 0 : index
    %11 = vector.load %arg4[%c0_10, %c0_11] : memref<128x128xbf16, #tpu.memory_space<vmem>>, vector<128x128xbf16>
    %cst_12 = arith.constant dense<0.000000e+00> : vector<16x128xf32>
    %12 = tpu.matmul %10, %11, %cst_12 {dimension_numbers = #tpu.dot_dimension_numbers<[1], [0], [0], [1], [0, 0, 1, 1], [], []>} : vector<16x128xbf16>, vector<128x128xbf16>, vector<16x128xf32> -> vector<16x128xf32>
    %c0_13 = arith.constant 0 : index
    %c0_14 = arith.constant 0 : index
    %13 = vector.load %arg5[%c0_13, %c0_14] : memref<1x128xf32, #tpu.memory_space<vmem>>, vector<1x128xf32>
    %14 = vector.broadcast %13 : vector<1x128xf32> to vector<16x128xf32>
    %15 = arith.addf %12, %14 : vector<16x128xf32>
    %c0_15 = arith.constant 0 : index
    %c0_16 = arith.constant 0 : index
    %16 = vector.load %arg6[%c0_15, %c0_16] : memref<16x128xf32, #tpu.memory_space<vmem>>, vector<16x128xf32>
    tpu.vector_store %arg6[%c0_15, %c0_16], %15 {strides = array<i32>} : memref<16x128xf32, #tpu.memory_space<vmem>>, vector<16x128xf32>,
    return
  }
  func.func @transform_0(%arg0: i32) -> (i32, i32) {
    %c0_i32 = arith.constant 0 : i32
    %c0_i32_0 = arith.constant 0 : i32
    return %arg0, %c0_i32 : i32, i32
  }
  func.func @transform_1(%arg0: i32) -> (i32, i32) {
    %c0_i32 = arith.constant 0 : i32
    %c0_i32_0 = arith.constant 0 : i32
    %c0_i32_1 = arith.constant 0 : i32
    return %c0_i32, %c0_i32_0 : i32, i32
  }
  func.func @transform_2(%arg0: i32) -> (i32, i32) {
    %c0_i32 = arith.constant 0 : i32
    %c0_i32_0 = arith.constant 0 : i32
    %c0_i32_1 = arith.constant 0 : i32
    return %c0_i32, %c0_i32_0 : i32, i32
  }
  func.func @transform_3(%arg0: i32) -> (i32, i32) {
    %c0_i32 = arith.constant 0 : i32
    %c0_i32_0 = arith.constant 0 : i32
    %c0_i32_1 = arith.constant 0 : i32
    return %c0_i32, %c0_i32_0 : i32, i32
  }
  func.func @transform_4(%arg0: i32) -> (i32, i32) {
    %c0_i32 = arith.constant 0 : i32
    %c0_i32_0 = arith.constant 0 : i32
    %c0_i32_1 = arith.constant 0 : i32
    return %c0_i32, %c0_i32_0 : i32, i32
  }
  func.func @transform_5(%arg0: i32) -> (i32, i32) {
    %c0_i32 = arith.constant 0 : i32
    %c0_i32_0 = arith.constant 0 : i32
    return %arg0, %c0_i32 : i32, i32
  }
}

</mosaic_0001>

<llo_original>
// kernel: _policy_forward.1
$region0: #{_policy_forward.1}
  #allocation0 [shape = 'u32[]', space=smem, size = 0x4, offset = 0x4, fixed_abs, tag = 'smem constant byte address 0x4 - core index']
  #allocation1 [shape = 'u32[144,128]{1,0:T(1,128)}', space=vmem, size = 0x12000, scoped, tag = 'internal scratch']
  #allocation2 [shape = 'bf16[16,128]{1,0:T(16,128)(2,1)}', space=vmem, size = 0x1000, scoped, tag = 'scratch operand']
  %s0 = inlined_call_operand.vmem [shape: bf16[16,128], index: 0, kind: input, shape index: {}]
  %s1 = inlined_call_operand.vmem [shape: bf16[128,128], index: 1, kind: input, shape index: {}]
  %s2 = inlined_call_operand.vmem [shape: f32[1,128], index: 2, kind: input, shape index: {}]
  %s3 = inlined_call_operand.vmem [shape: bf16[128,128], index: 3, kind: input, shape index: {}]
  %s4 = inlined_call_operand.vmem [shape: f32[1,128], index: 4, kind: input, shape index: {}]
  %s5 = inlined_call_operand.vmem [shape: f32[16,128], index: 5, kind: output, shape index: {}]
  %s6 = sld [smem:[#allocation0]]
  $region30: #{_policy_forward.1} parent=0
    _
  %s8 = ssub.s32 1, %s6
  %s9 = scalar_select 0, %s8, %s6
  // Predicated region
  $region2: #{_policy_forward.1} parent=0 // pred_check
    _
  $region3: #{_policy_forward.1} parent=0 // pred_check_branch
    %11 = sbr.rel (0) target = $region5
  $region4: #{_policy_forward.1} parent=0 // pred_region
    _
  $region5: #{_policy_forward.1} parent=0 // pred_fallthru
    _
  // Predicated region
  $region6: #{_policy_forward.1} parent=0 // pred_check
    _
  $region7: #{_policy_forward.1} parent=0 // pred_check_branch
    %13 = sbr.rel (0) target = $region9
  $region8: #{_policy_forward.1} parent=0 // pred_region
    _
  $region9: #{_policy_forward.1} parent=0 // pred_fallthru
    _
  // Predicated region
  $region10: #{_policy_forward.1} parent=0 // pred_check
    _
  $region11: #{_policy_forward.1} parent=0 // pred_check_branch
    %15 = sbr.rel (0) target = $region13
  $region12: #{_policy_forward.1} parent=0 // pred_region
    _
  $region13: #{_policy_forward.1} parent=0 // pred_fallthru
    _
  // Predicated region
  $region14: #{_policy_forward.1} parent=0 // pred_check
    _
  $region15: #{_policy_forward.1} parent=0 // pred_check_branch
    %17 = sbr.rel (0) target = $region17
  $region16: #{_policy_forward.1} parent=0 // pred_region
    _
  $region17: #{_policy_forward.1} parent=0 // pred_fallthru
    _
  // Predicated region
  $region18: #{_policy_forward.1} parent=0 // pred_check
    _
  $region19: #{_policy_forward.1} parent=0 // pred_check_branch
    %19 = sbr.rel (0) target = $region21
  $region20: #{_policy_forward.1} parent=0 // pred_region
    _
  $region21: #{_policy_forward.1} parent=0 // pred_fallthru
    _
  %v21 = vld [vmem:[%s0] sm:$0xf]
  %v22 = vld [vmem:[%s0 + $0x4] sm:$0xf]
  %v23 = vld [vmem:[%s1] sm:$0xf]
  %v24 = vld [vmem:[%s1 + $0x4] sm:$0xf]
  %v25 = vld [vmem:[%s1 + $0x8] sm:$0xf]
  %v26 = vld [vmem:[%s1 + $0xc] sm:$0xf]
  %v27 = vld [vmem:[%s1 + $0x10] sm:$0xf]
  %v28 = vld [vmem:[%s1 + $0x14] sm:$0xf]
  %v29 = vld [vmem:[%s1 + $0x18] sm:$0xf]
  %v30 = vld [vmem:[%s1 + $0x1c] sm:$0xf]
  %v31 = vld [vmem:[%s1 + $0x20] sm:$0xf]
  %v32 = vld [vmem:[%s1 + $0x24] sm:$0xf]
  %v33 = vld [vmem:[%s1 + $0x28] sm:$0xf]
  %v34 = vld [vmem:[%s1 + $0x2c] sm:$0xf]
  %v35 = vld [vmem:[%s1 + $0x30] sm:$0xf]
  %v36 = vld [vmem:[%s1 + $0x34] sm:$0xf]
  %v37 = vld [vmem:[%s1 + $0x38] sm:$0xf]
  %v38 = vld [vmem:[%s1 + $0x3c] sm:$0xf]
  %v39 = vld [vmem:[%s2] sm:$0x1]
  %v41 = vlaneseq
  %v42 = vshrl.u32 %v41, 7
  %v43 = vsub.s32 0, %v42
  %v44 = vrot.slane %v39, %v43
  %v48 = vunpack.c.l.b16 %v21
  %v49 = vunpack.c.l.b16 %v22
  %v50 = vpack.c.b16 %v49, %v48
  %v68 = vunpack.c.l.b16 %v23
  %v69 = vunpack.c.l.b16 %v24
  %v70 = vunpack.c.l.b16 %v25
  %v71 = vunpack.c.l.b16 %v26
  %v72 = vunpack.c.l.b16 %v27
  %v73 = vunpack.c.l.b16 %v28
  %v74 = vunpack.c.l.b16 %v29
  %v75 = vunpack.c.l.b16 %v30
  %v76 = vunpack.c.l.b16 %v31
  %v77 = vunpack.c.l.b16 %v32
  %v78 = vunpack.c.l.b16 %v33
  %v79 = vunpack.c.l.b16 %v34
  %v80 = vunpack.c.l.b16 %v35
  %v81 = vunpack.c.l.b16 %v36
  %v82 = vunpack.c.l.b16 %v37
  %v83 = vunpack.c.l.b16 %v38
  %v84 = vpack.c.b16 %v69, %v68
  %v85 = vpack.c.b16 %v71, %v70
  %v86 = vpack.c.b16 %v73, %v72
  %v87 = vpack.c.b16 %v75, %v74
  %v88 = vpack.c.b16 %v77, %v76
  %v89 = vpack.c.b16 %v79, %v78
  %v90 = vpack.c.b16 %v81, %v80
  %v91 = vpack.c.b16 %v83, %v82
  %100 = vmatprep.subr.bf16.mxu0 0
  %101 = vmatpush1.bf16.msra.mxu0 %v84
  %102 = vmatprep.subr.bf16.mxu0 0
  %103 = vmatpush1.bf16.msra.mxu0 %v85
  %104 = vmatprep.subr.bf16.mxu0 0
  %105 = vmatpush1.bf16.msra.mxu0 %v86
  %106 = vmatprep.subr.bf16.mxu0 0
  %107 = vmatpush1.bf16.msra.mxu0 %v87
  %108 = vmatprep.subr.bf16.mxu0 0
  %109 = vmatpush1.bf16.msra.mxu0 %v88
  %110 = vmatprep.subr.bf16.mxu0 0
  %111 = vmatpush1.bf16.msra.mxu0 %v89
  %112 = vmatprep.subr.bf16.mxu0 0
  %113 = vmatpush1.bf16.msra.mxu0 %v90
  %114 = vmatprep.subr.bf16.mxu0 0
  %115 = vmatpush1.bf16.msra.mxu0 %v91
  %116 = vmatprep.subr.bf16.mxu0 0
  %117 = vmatpush1.bf16.msra.mxu0 0
  %118 = vmatprep.subr.bf16.mxu0 0
  %119 = vmatpush1.bf16.msra.mxu0 0
  %120 = vmatprep.subr.bf16.mxu0 0
  %121 = vmatpush1.bf16.msra.mxu0 0
  %122 = vmatprep.subr.bf16.mxu0 0
  %123 = vmatpush1.bf16.msra.mxu0 0
  %124 = vmatprep.subr.bf16.mxu0 0
  %125 = vmatpush1.bf16.msra.mxu0 0
  %126 = vmatprep.subr.bf16.mxu0 0
  %127 = vmatpush1.bf16.msra.mxu0 0
  %128 = vmatprep.subr.bf16.mxu0 0
  %129 = vmatpush1.bf16.msra.mxu0 0
  %130 = vmatprep.subr.bf16.mxu0 0
  %131 = vmatpush1.bf16.msra.mxu0 0
  %132 = vmatprep.mubr.bf16.mxu0 0
  %133 = vmatmul.mubr.bf16.gmra.mrb[0].mxu0 %v50
  %v134 = vpop.f32.mrb[0].mxu0
  %v135 = vadd.f32 %v44, %v134
  %v136 = vpop.f32.mrb[0].mxu0
  %v137 = vpop.f32.mrb[0].mxu0
  %v138 = vadd.f32 %v44, %v137
  %v139 = vpop.f32.mrb[0].mxu0
  %140 = vdwg.mxu0
  %v141 = vmax.f32 %v135, 0.0
  %v142 = vmax.f32 %v138, 0.0
  %v143 = vpack.c.bf16 %v142, %v141
  %144 = vst [vmem:[#allocation2] sm:$0xff] %v143
  %v145 = vld [vmem:[#allocation2] sm:$0xff]
  %v146 = vld [vmem:[%s3] sm:$0xf]
  %v147 = vld [vmem:[%s3 + $0x4] sm:$0xf]
  %v148 = vld [vmem:[%s3 + $0x8] sm:$0xf]
  %v149 = vld [vmem:[%s3 + $0xc] sm:$0xf]
  %v150 = vld [vmem:[%s3 + $0x10] sm:$0xf]
  %v151 = vld [vmem:[%s3 + $0x14] sm:$0xf]
  %v152 = vld [vmem:[%s3 + $0x18] sm:$0xf]
  %v153 = vld [vmem:[%s3 + $0x1c] sm:$0xf]
  %v154 = vld [vmem:[%s3 + $0x20] sm:$0xf]
  %v155 = vld [vmem:[%s3 + $0x24] sm:$0xf]
  %v156 = vld [vmem:[%s3 + $0x28] sm:$0xf]
  %v157 = vld [vmem:[%s3 + $0x2c] sm:$0xf]
  %v158 = vld [vmem:[%s3 + $0x30] sm:$0xf]
  %v159 = vld [vmem:[%s3 + $0x34] sm:$0xf]
  %v160 = vld [vmem:[%s3 + $0x38] sm:$0xf]
  %v161 = vld [vmem:[%s3 + $0x3c] sm:$0xf]
  %v162 = vld [vmem:[%s4] sm:$0x1]
  %v164 = vlaneseq
  %v165 = vshrl.u32 %v164, 7
  %v166 = vsub.s32 0, %v165
  %v167 = vrot.slane %v162, %v166
  %v185 = vunpack.c.l.b16 %v146
  %v186 = vunpack.c.l.b16 %v147
  %v187 = vunpack.c.l.b16 %v148
  %v188 = vunpack.c.l.b16 %v149
  %v189 = vunpack.c.l.b16 %v150
  %v190 = vunpack.c.l.b16 %v151
  %v191 = vunpack.c.l.b16 %v152
  %v192 = vunpack.c.l.b16 %v153
  %v193 = vunpack.c.l.b16 %v154
  %v194 = vunpack.c.l.b16 %v155
  %v195 = vunpack.c.l.b16 %v156
  %v196 = vunpack.c.l.b16 %v157
  %v197 = vunpack.c.l.b16 %v158
  %v198 = vunpack.c.l.b16 %v159
  %v199 = vunpack.c.l.b16 %v160
  %v200 = vunpack.c.l.b16 %v161
  %v201 = vpack.c.b16 %v186, %v185
  %v202 = vpack.c.b16 %v188, %v187
  %v203 = vpack.c.b16 %v190, %v189
  %v204 = vpack.c.b16 %v192, %v191
  %v205 = vpack.c.b16 %v194, %v193
  %v206 = vpack.c.b16 %v196, %v195
  %v207 = vpack.c.b16 %v198, %v197
  %v208 = vpack.c.b16 %v200, %v199
  %217 = vmatprep.subr.bf16.mxu0 0
  %218 = vmatpush1.bf16.msra.mxu0 %v201
  %219 = vmatprep.subr.bf16.mxu0 0
  %220 = vmatpush1.bf16.msra.mxu0 %v202
  %221 = vmatprep.subr.bf16.mxu0 0
  %222 = vmatpush1.bf16.msra.mxu0 %v203
  %223 = vmatprep.subr.bf16.mxu0 0
  %224 = vmatpush1.bf16.msra.mxu0 %v204
  %225 = vmatprep.subr.bf16.mxu0 0
  %226 = vmatpush1.bf16.msra.mxu0 %v205
  %227 = vmatprep.subr.bf16.mxu0 0
  %228 = vmatpush1.bf16.msra.mxu0 %v206
  %229 = vmatprep.subr.bf16.mxu0 0
  %230 = vmatpush1.bf16.msra.mxu0 %v207
  %231 = vmatprep.subr.bf16.mxu0 0
  %232 = vmatpush1.bf16.msra.mxu0 %v208
  %233 = vmatprep.subr.bf16.mxu0 0
  %234 = vmatpush1.bf16.msra.mxu0 0
  %235 = vmatprep.subr.bf16.mxu0 0
  %236 = vmatpush1.bf16.msra.mxu0 0
  %237 = vmatprep.subr.bf16.mxu0 0
  %238 = vmatpush1.bf16.msra.mxu0 0
  %239 = vmatprep.subr.bf16.mxu0 0
  %240 = vmatpush1.bf16.msra.mxu0 0
  %241 = vmatprep.subr.bf16.mxu0 0
  %242 = vmatpush1.bf16.msra.mxu0 0
  %243 = vmatprep.subr.bf16.mxu0 0
  %244 = vmatpush1.bf16.msra.mxu0 0
  %245 = vmatprep.subr.bf16.mxu0 0
  %246 = vmatpush1.bf16.msra.mxu0 0
  %247 = vmatprep.subr.bf16.mxu0 0
  %248 = vmatpush1.bf16.msra.mxu0 0
  %249 = vmatprep.mubr.bf16.mxu0 0
  %250 = vmatmul.mubr.bf16.gmra.mrb[0].mxu0 %v145
  %v251 = vpop.f32.mrb[0].mxu0
  %v252 = vadd.f32 %v167, %v251
  %v253 = vpop.f32.mrb[0].mxu0
  %v254 = vpop.f32.mrb[0].mxu0
  %v255 = vadd.f32 %v167, %v254
  %v256 = vpop.f32.mrb[0].mxu0
  %257 = vdwg.mxu0
  %258 = vst [vmem:[%s5] sm:$0xff] %v252
  %259 = vst [vmem:[%s5 + $0x8] sm:$0xff] %v255
  // Predicated region
  $region22: #{_policy_forward.1} parent=0 // pred_check
    _
  $region23: #{_policy_forward.1} parent=0 // pred_check_branch
    %261 = sbr.rel (0) target = $region25
  $region24: #{_policy_forward.1} parent=0 // pred_region
    _
  $region25: #{_policy_forward.1} parent=0 // pred_fallthru
    _
  // Predicated region
  $region26: #{_policy_forward.1} parent=0 // pred_check
    _
  $region27: #{_policy_forward.1} parent=0 // pred_check_branch
    %263 = sbr.rel (0) target = $region29
  $region28: #{_policy_forward.1} parent=0 // pred_region
    _
  $region29: #{_policy_forward.1} parent=0 // pred_fallthru
    _

</llo_original>
